<compile_context>
chip_gen: v7x
topology: tpu7x:2x2x1
jax: 0.10.0
libtpu: 0.0.40
codegen_flags: <defaults>
</compile_context>

<pallas_src>
import functools
import typing

import numpy as np

import jax
import jax.numpy as jnp
from jax.experimental import pallas as pl
from jax.experimental.pallas import tpu as pltpu


BatchDictType = typing.Dict[str, typing.Any]

_LANES = 128

# Bit-exact integer "container" dtype per byte-width class.  Every TPU-safe
# scalar dtype is bitcast on host into one of these three containers so one
# forward() needs at most three Pallas launches (usually just one).
_CONTAINER_FOR_DTYPE: typing.Dict[np.dtype, str] = {
    np.dtype(np.float32): "uint32",
    np.dtype(np.int32): "uint32",
    np.dtype(np.uint32): "uint32",
    np.dtype(np.float16): "int16",
    np.dtype(np.int16): "int16",
    np.dtype(np.uint16): "int16",
    np.dtype(np.int8): "int8",
    np.dtype(np.uint8): "int8",
}

# Native packed-vreg sublane count per container dtype: 8 for 32-bit, 16 for
# 16-bit, 32 for 8-bit -> every slab is a lane-dense native tile (no relayout).
_NATIVE_SUBLANES = {"uint32": 8, "int16": 16, "int8": 32}

# Single-block size cap (generation-safe, well under the scoped-VMEM default on
# v5e/v6e/v7x even counting input+output buffers).  Above this (never hit for
# realistic scalar counts) we fall back to a simple 1-D row grid.
_MAX_SINGLE_BLOCK_BYTES = 4 << 20
_GRID_TILE_ROWS = 1024  # multiple of 8/16/32 -> native tile for every container


def _copy_kernel(x_ref, o_ref):
    """Identity copy of one lane-dense slab (aligned, unmasked vector stores)."""
    o_ref[...] = x_ref[...]


@functools.lru_cache(maxsize=None)
def _get_pack_copy_fn(container_name: str, rows: int):
    """Build (once per (container dtype, rows)) the single-launch pallas_call
    for a packed (rows, 128) scalar slab.  Input and output are aliased since
    the kernel is an identity copy."""
    dtype = np.dtype(container_name)
    out_shape = jax.ShapeDtypeStruct((rows, _LANES), dtype)
    nbytes = rows * _LANES * dtype.itemsize
    if nbytes <= _MAX_SINGLE_BLOCK_BYTES:
        # One full-array block, no grid: one aligned DMA each way, one launch.
        return pl.pallas_call(
            _copy_kernel,
            out_shape=out_shape,
            in_specs=[
                pl.BlockSpec(
                    (rows, _LANES),
                    lambda: (0, 0),
                    memory_space=pltpu.MemorySpace.VMEM,
                )
            ],
            out_specs=pl.BlockSpec(
                (rows, _LANES),
                lambda: (0, 0),
                memory_space=pltpu.MemorySpace.VMEM,
            ),
            input_output_aliases={0: 0},
        )
    # Huge-group fallback: tile rows with a 1-D grid (kept "arbitrary"; no
    # megacore sharding / extra buffering is worth it for a memcpy).
    num_tiles = rows // _GRID_TILE_ROWS
    return pl.pallas_call(
        _copy_kernel,
        out_shape=out_shape,
        grid=(num_tiles,),
        in_specs=[pl.BlockSpec((_GRID_TILE_ROWS, _LANES), lambda i: (i, 0))],
        out_specs=pl.BlockSpec((_GRID_TILE_ROWS, _LANES), lambda i: (i, 0)),
        input_output_aliases={0: 0},
        compiler_params=pltpu.CompilerParams(dimension_semantics=("arbitrary",)),
    )


def _device_extract_group(packed: np.ndarray):
    """Pack a 1-D host array of bitcast scalars into ONE lane-dense slab,
    transfer it once (single jnp.asarray), and dispatch ONE Pallas launch.
    Returns the un-synchronized device result; the caller reads everything
    back with a single jax.device_get."""
    dtype = packed.dtype
    sub = _NATIVE_SUBLANES[dtype.name]
    n = packed.shape[0]
    rows = -(-n // _LANES)            # ceil(n / 128)
    rows = -(-rows // sub) * sub      # round up to the native sublane count
    if rows * _LANES * dtype.itemsize > _MAX_SINGLE_BLOCK_BYTES:
        rows = -(-rows // _GRID_TILE_ROWS) * _GRID_TILE_ROWS
    slab = np.zeros((rows, _LANES), dtype=dtype)
    slab.reshape(-1)[:n] = packed
    fn = _get_pack_copy_fn(dtype.name, rows)
    return fn(jnp.asarray(slab))      # one H2D + one launch; no blocking here


class ConvertItemTensorsToItems:
    """Converts single-item numpy arrays into the `.item()` version of those arrays.

    Same semantics as the PyTorch nn.Module; for TPU-safe dtypes the scalar
    extraction runs through at most three batched Pallas TPU identity kernels
    (one launch, one H2D and one D2H per byte-width group, single sync point).
    """

    def __init__(
        self,
        keys_to_ignore: typing.Optional[typing.Sequence[str]] = (),
        use_pallas: bool = True,
    ):
        if not keys_to_ignore:
            keys_to_ignore = []
        assert isinstance(keys_to_ignore, typing.Sequence)
        self.keys_to_ignore = keys_to_ignore
        # TODO(synk): for host-resident numpy scalars a pure host .item() is
        # strictly faster than any device round-trip; the Pallas path is kept
        # behind this flag (default on so the kernel is exercised here).
        self.use_pallas = use_pallas

    def __call__(self, batch: BatchDictType) -> BatchDictType:
        return self.forward(batch)

    def forward(self, batch: BatchDictType) -> BatchDictType:
        # --- pass 1 (host): collect qualifying size-1 arrays, bitcast & group
        #     by container byte-width; unsafe dtypes resolve on host exactly ---
        groups: typing.Dict[str, typing.Tuple[list, list, list]] = {}
        for key in list(batch.keys()):
            if key in self.keys_to_ignore:
                continue
            val = batch[key]
            if not isinstance(val, np.ndarray):
                continue
            if val.size != 1:
                continue
            container = (
                _CONTAINER_FOR_DTYPE.get(val.dtype) if self.use_pallas else None
            )
            if container is None:
                # TODO(synk): f64/i64/u64/bool/complex scalars stay on host — a
                # TPU round-trip would alter dtype/precision vs. the reference.
                batch[key] = val.item()
                continue
            keys, dtypes, vals = groups.setdefault(container, ([], [], []))
            keys.append(key)
            dtypes.append(val.dtype)
            vals.append(val.reshape(1).view(np.dtype(container))[0])  # bit-exact

        # --- pass 2: one coalesced H2D + one Pallas launch per container group
        #     (dispatch only; no per-key or per-group sync) ---
        pending = []
        for container, (keys, dtypes, vals) in groups.items():
            packed = np.asarray(vals, dtype=np.dtype(container))
            pending.append((keys, dtypes, _device_extract_group(packed)))

        # --- pass 3: single synchronization / readback point for everything ---
        if pending:
            host_slabs = jax.device_get([dev for _, _, dev in pending])
            for (keys, dtypes, _), slab in zip(pending, host_slabs):
                flat = np.asarray(slab).reshape(-1)
                for i, (key, orig_dtype) in enumerate(zip(keys, dtypes)):
                    batch[key] = flat[i : i + 1].view(orig_dtype)[0].item()

        return batch

    def __repr__(self) -> str:
        return f"{self.__class__.__name__}(self.keys_to_ignore={self.keys_to_ignore!r})"


if __name__ == "__main__":
    key = jax.random.PRNGKey(0)
    k_img, k_scalar = jax.random.split(key)

    # Deterministic synthetic "batch dict" consistent with what this transform sees.
    image = np.asarray(jax.random.normal(k_img, (2, 4, 16, 16), dtype=jnp.float32))
    scalar_f32 = np.asarray(jax.random.normal(k_scalar, (1, 1), dtype=jnp.float32))
    scalar_i32 = np.array([7], dtype=np.int32)            # -> uint32 group
    scalar_f16 = np.array([0.25], dtype=np.float16)       # -> int16 group
    scalar_i8 = np.array([[-5]], dtype=np.int8)           # -> int8 group
    scalar_u8 = np.array([200], dtype=np.uint8)           # -> int8 group
    scalar_b = np.array([True])                           # bool -> host path
    scalar_f64 = np.array([1.5], dtype=np.float64)        # f64 -> host path, exact
    ignored_scalar = np.array([3.0], dtype=np.float32)    # ignored key, untouched

    batch = {
        "image": image,             # size != 1 -> untouched
        "label": scalar_i32,        # -> 7 (python int)
        "confidence": scalar_f32,   # -> float (bit-exact)
        "half": scalar_f16,         # -> 0.25 (python float)
        "tiny": scalar_i8,          # -> -5 (python int)
        "byte": scalar_u8,          # -> 200 (python int)
        "flag": scalar_b,           # -> True (python bool)
        "weight64": scalar_f64,     # -> 1.5 (python float, exact)
        "sample_id": "abc-123",     # non-array -> untouched
        "skip_me": ignored_scalar,  # in keys_to_ignore -> untouched
    }

    transform = ConvertItemTensorsToItems(keys_to_ignore=("skip_me",))
    out = transform(batch)

    # --- correctness checks against the PyTorch/numpy reference semantics ---
    assert isinstance(out["image"], np.ndarray) and out["image"].shape == (2, 4, 16, 16)
    assert isinstance(out["label"], int) and out["label"] == 7
    assert isinstance(out["confidence"], float) and out["confidence"] == float(scalar_f32.item())
    assert isinstance(out["half"], float) and out["half"] == 0.25
    assert isinstance(out["tiny"], int) and out["tiny"] == -5
    assert isinstance(out["byte"], int) and out["byte"] == 200
    assert isinstance(out["flag"], bool) and out["flag"] is True
    assert isinstance(out["weight64"], float) and out["weight64"] == 1.5
    assert out["sample_id"] == "abc-123"
    assert isinstance(out["skip_me"], np.ndarray) and out["skip_me"].shape == (1,)

    # Repeated forward() hits the cached compiled kernels (no re-trace/compile).
    batch2 = {"a": np.array([3], dtype=np.int32), "b": np.array([2.25], dtype=np.float32)}
    out2 = transform(batch2)
    assert out2["a"] == 3 and out2["b"] == 2.25

    # Make sure the Pallas path itself is live: one direct invocation + block.
    direct = _device_extract_group(np.array([2.5], dtype=np.float32).view(np.uint32))
    jax.block_until_ready(direct)
    back = np.asarray(jax.device_get(direct)).reshape(-1)[:1].view(np.float32)[0]
    assert float(back) == 2.5

    print("KERNEL_OK")
</pallas_src>

<mosaic_0001>
module attributes {stable_mosaic.version = 11 : i64} {
  func.func @_copy_kernel(%arg0: memref<8x128xi32, #tpu.memory_space<vmem>>, %arg1: memref<8x128xi32, #tpu.memory_space<vmem>>) attributes {dimension_semantics = [], scalar_prefetch = 0 : i64, scratch_operands = 0 : i64, tpu.core_type = #tpu.core_type<tc>} {
    %c0 = arith.constant 0 : index
    %c0_0 = arith.constant 0 : index
    %0 = vector.load %arg0[%c0, %c0_0] : memref<8x128xi32, #tpu.memory_space<vmem>>, vector<8x128xi32>
    %c0_1 = arith.constant 0 : index
    %c0_2 = arith.constant 0 : index
    %1 = vector.load %arg1[%c0_1, %c0_2] : memref<8x128xi32, #tpu.memory_space<vmem>>, vector<8x128xi32>
    tpu.vector_store %arg1[%c0_1, %c0_2], %0 {strides = array<i32>} : memref<8x128xi32, #tpu.memory_space<vmem>>, vector<8x128xi32>,
    return
  }
}

</mosaic_0001>

<llo_original>
// kernel: tpu_custom_call.1
$region0: #{tpu_custom_call.1}
  #allocation0 [shape = 'u32[]', space=smem, size = 0x4, offset = 0x4, fixed_abs, tag = 'smem constant byte address 0x4 - core index']
  #allocation1 [shape = 'u32[144,128]{1,0:T(1,128)}', space=vmem, size = 0x12000, scoped, tag = 'internal scratch']
  %s0 = inlined_call_operand.hbm [shape: u32[8,128], index: 0, kind: input, shape index: {}, may-alias: {0,1}]
  %s1 = inlined_call_operand.hbm [shape: u32[8,128], index: 1, kind: output, shape index: {}, may-alias: {0,1}]
  %s2 = sld [smem:[#allocation0]]
  $region18: #{tpu_custom_call.1} parent=0
    _
  %s4 = ssub.s32 1, %s2
  %s5 = scalar_select 0, %s4, %s2
  $region1: #{tpu_custom_call.1} parent=0
    #allocation2 [shape = 'u8[4096]{0}', space=vmem, size = 0x1000, scoped, tag = 'input window, operand 0, single buffered']
    #allocation3 [shape = 's32[1]{0}', space=sflag, size = 0x4, scoped, tag = 'scoped memory for tpu_custom_call.1']
    #allocation4 [shape = 's32[1]{0}', space=sflag, size = 0x4, scoped, tag = 'scoped memory for tpu_custom_call.1']
    #allocation5 [shape = 'u8[4096]{0}', space=vmem, size = 0x1000, scoped, tag = 'output window, operand 0, single buffered']
    %6 = vsyncpa [#allocation3], 0
    %7 = vsyncpa [#allocation4], 0
    // Predicated region
    $region2: #{tpu_custom_call.1} parent=1 // pred_check
      _
    $region3: #{tpu_custom_call.1} parent=1 // pred_check_branch
      %9 = sbr.rel (0) target = $region5
    $region4: #{tpu_custom_call.1} parent=1 // pred_region
      %s11 = ssub.s32 128, 128
      %12 = vsyncadd [#allocation3], %s11
      %s14 = sshll.u32 [#allocation2], 4
      %s15 = int_to_ptr.vmem [resolvable:$true] %s14
      %17 = dma.hbm_to_vmem [thread:$0]  %s0, 128, %s15, [#allocation3]
    $region5: #{tpu_custom_call.1} parent=1 // pred_fallthru
      _
    // Predicated region
    $region6: #{tpu_custom_call.1} parent=1 // pred_check
      _
    $region7: #{tpu_custom_call.1} parent=1 // pred_check_branch
      %19 = sbr.rel (0) target = $region9
    $region8: #{tpu_custom_call.1} parent=1 // pred_region
      %20 = dma.done [#allocation3], 128
    $region9: #{tpu_custom_call.1} parent=1 // pred_fallthru
      _
    %v21 = vld [vmem:[#allocation2] sm:$0xff]
    %22 = vst [vmem:[#allocation5] sm:$0xff] %v21
    // Predicated region
    $region10: #{tpu_custom_call.1} parent=1 // pred_check
      _
    $region11: #{tpu_custom_call.1} parent=1 // pred_check_branch
      %24 = sbr.rel (0) target = $region13
    $region12: #{tpu_custom_call.1} parent=1 // pred_region
      %s26 = ssub.s32 128, 128
      %27 = vsyncadd [#allocation4], %s26
      %s29 = sshll.u32 [#allocation5], 4
      %s30 = int_to_ptr.vmem [resolvable:$true] %s29
      %32 = dma.vmem_to_hbm [thread:$0]  %s30, 128, %s1, [#allocation4]
    $region13: #{tpu_custom_call.1} parent=1 // pred_fallthru
      _
    // Predicated region
    $region14: #{tpu_custom_call.1} parent=1 // pred_check
      _
    $region15: #{tpu_custom_call.1} parent=1 // pred_check_branch
      %34 = sbr.rel (0) target = $region17
    $region16: #{tpu_custom_call.1} parent=1 // pred_region
      %35 = dma.done [#allocation4], 128
    $region17: #{tpu_custom_call.1} parent=1 // pred_fallthru
      _
    %36 = vsyncpa [#allocation3], 1
    %37 = vsyncpa [#allocation4], 1

</llo_original>
